<compile_context>
chip_gen: v6e
topology: v6e:2x2x1
jax: 0.10.0
libtpu: 0.0.40
codegen_flags: <defaults>
</compile_context>

<pallas_src>
import functools

import jax
import jax.numpy as jnp
from jax.experimental import pallas as pl
from jax.experimental.pallas import tpu as pltpu

BN_EPS = 1e-5


def _round_up(a, b):
    return (a + b - 1) // b * b


@functools.lru_cache(maxsize=1)
def _vmem_budget():
    """(scoped_vmem_limit_bytes, per-call tile budget) derived per TPU generation."""
    try:
        cap = int(pltpu.get_tpu_info().vmem_capacity_bytes)
    except Exception:
        cap = 64 * 1024 * 1024          # conservative fallback (v7x per-TC physical VMEM)
    limit = min(cap * 3 // 4, 112 * 1024 * 1024)   # 96 MiB on v5e/v6e, 48 MiB on v7x
    budget = max(limit // 2, limit - 8 * 1024 * 1024)
    return int(limit), int(budget)


def _pick_block_rows(n, in_dim, out_dim, op_bytes, x_bytes, out_bytes, budget, row_mult):
    """Largest row tile whose per-pass (not summed-across-passes) footprint fits VMEM."""
    cand = _round_up(max(min(n, 2048), row_mult), row_mult)
    while cand > row_mult:
        w_res = 2 * in_dim * out_dim * op_bytes                 # resident weight (2 bufs)
        fp1 = 2 * cand * in_dim * x_bytes + w_res + 4 * out_dim * 4
        fp2 = (2 * cand * in_dim * x_bytes + w_res
               + 2 * cand * out_dim * out_bytes + 4 * out_dim * 4)
        if max(fp1, fp2) <= budget:                             # passes never coexist
            return cand
        cand = _round_up(cand // 2, row_mult)
    return row_mult


def _stats_kernel(x_ref, w_ref, sum_ref, sumsq_ref, *, op_dtype, n_rows, block_rows):
    """Pass 1: y = x @ W (MXU, f32 acc); accumulate per-channel sum / sum-of-squares."""

    @pl.when(pl.program_id(0) == 0)
    def _():
        sum_ref[...] = jnp.zeros_like(sum_ref)
        sumsq_ref[...] = jnp.zeros_like(sumsq_ref)

    x = x_ref[...]
    if n_rows % block_rows != 0:
        # Ragged last tile: zero the out-of-bounds rows so they contribute exactly 0 to the
        # batch statistics (jnp.where also neutralizes any non-finite garbage in OOB rows).
        row = jax.lax.broadcasted_iota(jnp.int32, x.shape, 0)
        x = jnp.where(row + pl.program_id(0) * block_rows < n_rows, x, jnp.zeros_like(x))

    y = jnp.dot(x.astype(op_dtype), w_ref[...], preferred_element_type=jnp.float32)
    sum_ref[...] += jnp.sum(y, axis=0, keepdims=True)
    sumsq_ref[...] += jnp.sum(y * y, axis=0, keepdims=True)


def _bn_relu_kernel(x_ref, w_ref, scale_ref, shift_ref, o_ref, *, op_dtype):
    """Pass 2: recompute y from x and apply fused normalize + affine + ReLU (f32 math)."""
    y = jnp.dot(x_ref[...].astype(op_dtype), w_ref[...], preferred_element_type=jnp.float32)
    o_ref[...] = jnp.maximum(y * scale_ref[...] + shift_ref[...], 0.0).astype(o_ref.dtype)


@functools.partial(jax.jit, static_argnames=("mxu_dtype", "block_rows"))
def linear_layer_forward(x, w, gamma, beta, *, mxu_dtype=jnp.bfloat16, block_rows=None):
    """Pallas implementation of LinearLayer.forward.

    x:     (N, in_dim) or (B, S, in_dim)
    w:     (out_dim, in_dim)   -- nn.Linear weight layout
    gamma: (out_dim,)          -- BatchNorm1d weight
    beta:  (out_dim,)          -- BatchNorm1d bias
    mxu_dtype: MXU operand dtype (bf16 default; accumulation and all BN math stay f32).
               With bf16 operands the batch statistics deviate slightly (~1e-2) from a pure
               f32 PyTorch reference.  None -> use the input dtype.
    """
    orig_shape = x.shape
    x2d = x.reshape(-1, x.shape[-1]) if x.ndim == 3 else x
    n, in_dim = x2d.shape
    out_dim = w.shape[0]

    op_dtype = jnp.dtype(mxu_dtype) if mxu_dtype is not None else jnp.dtype(x2d.dtype)
    op_bytes = op_dtype.itemsize
    x_bytes = jnp.dtype(x2d.dtype).itemsize
    out_bytes = x_bytes
    row_mult = 16 if op_bytes <= 2 else 8   # bf16 packs 16 rows per vreg sublane group

    vmem_limit, tile_budget = _vmem_budget()
    if block_rows is None:
        block_rows = _pick_block_rows(n, in_dim, out_dim, op_bytes, x_bytes, out_bytes,
                                      tile_budget, row_mult)
    block_rows = max(row_mult, _round_up(int(block_rows), row_mult))
    grid_rows = pl.cdiv(n, block_rows)

    # One-time weight transpose + cast in the wrapper (constant, fully amortized) so both
    # passes run a plain (M,K)@(K,N) matmul with no per-step transpose of the resident W.
    wk = w.T.astype(op_dtype)                                   # (in_dim, out_dim)
    # Note: the weight's index_map is constant; a single pipeline buffer would suffice
    # (pl.Buffered(1)), but double-buffering this small resident block is kept for safety.

    # ---- Pass 1: streamed matmul + per-channel sum / sum-of-squares (no y written) ------
    ssum, ssq = pl.pallas_call(
        functools.partial(_stats_kernel, op_dtype=op_dtype, n_rows=n,
                          block_rows=block_rows),
        out_shape=(jax.ShapeDtypeStruct((1, out_dim), jnp.float32),
                   jax.ShapeDtypeStruct((1, out_dim), jnp.float32)),
        grid=(grid_rows,),
        in_specs=[
            pl.BlockSpec((block_rows, in_dim), lambda i: (i, 0)),
            pl.BlockSpec((in_dim, out_dim), lambda i: (0, 0)),
        ],
        out_specs=(
            pl.BlockSpec((1, out_dim), lambda i: (0, 0)),        # resident accumulator
            pl.BlockSpec((1, out_dim), lambda i: (0, 0)),        # resident accumulator
        ),
        compiler_params=pltpu.CompilerParams(
            dimension_semantics=("arbitrary",),                  # accumulator carried
            vmem_limit_bytes=vmem_limit),
    )(x2d, wk)

    # Per-channel scale/shift from the batch statistics (tiny (1, C) f32 math, done once).
    inv_n = 1.0 / float(n)
    mean = ssum * inv_n
    var = jnp.maximum(ssq * inv_n - mean * mean, 0.0)            # biased (training) variance
    scale = gamma.astype(jnp.float32).reshape(1, out_dim) * jax.lax.rsqrt(var + BN_EPS)
    shift = beta.astype(jnp.float32).reshape(1, out_dim) - mean * scale

    # ---- Pass 2: recompute y and fuse normalize + affine + ReLU; single output write ----
    out = pl.pallas_call(
        functools.partial(_bn_relu_kernel, op_dtype=op_dtype),
        out_shape=jax.ShapeDtypeStruct((n, out_dim), x2d.dtype),
        grid=(grid_rows,),
        in_specs=[
            pl.BlockSpec((block_rows, in_dim), lambda i: (i, 0)),
            pl.BlockSpec((in_dim, out_dim), lambda i: (0, 0)),
            pl.BlockSpec((1, out_dim), lambda i: (0, 0)),
            pl.BlockSpec((1, out_dim), lambda i: (0, 0)),
        ],
        out_specs=pl.BlockSpec((block_rows, out_dim), lambda i: (i, 0)),
        compiler_params=pltpu.CompilerParams(
            dimension_semantics=("parallel",),                   # stateless row axis
            vmem_limit_bytes=vmem_limit),
    )(x2d, wk, scale, shift)

    if x.ndim == 3:
        out = out.reshape(orig_shape[0], orig_shape[1], out_dim)
    return out


if __name__ == "__main__":
    # N = 2*100 = 200 rows -> with block_rows=64 the grid is cdiv(200,64)=4 with a ragged
    # 8-row last tile, exercising the in-kernel row mask and the clamped output writeback.
    B, S, IN_DIM, OUT_DIM = 2, 100, 32, 64

    key = jax.random.PRNGKey(0)
    kx, kw, kg, kb = jax.random.split(key, 4)

    x = jax.random.normal(kx, (B, S, IN_DIM), dtype=jnp.float32)
    # nn.Linear(in_dim, out_dim, bias=False) weight layout: (out_dim, in_dim)
    w = jax.random.normal(kw, (OUT_DIM, IN_DIM), dtype=jnp.float32) * (1.0 / IN_DIM ** 0.5)
    # BatchNorm1d affine params (perturbed from init to exercise the affine path)
    gamma = 1.0 + 0.1 * jax.random.normal(kg, (OUT_DIM,), dtype=jnp.float32)
    beta = 0.1 * jax.random.normal(kb, (OUT_DIM,), dtype=jnp.float32)

    # Pure-JAX f32 reference with exact PyTorch training-mode BatchNorm semantics.
    y_ref = jnp.einsum("bsi,oi->bso", x, w).reshape(-1, OUT_DIM)
    mean = y_ref.mean(axis=0)
    var = ((y_ref - mean) ** 2).mean(axis=0)          # biased (training-mode) variance
    ref = jnp.maximum((y_ref - mean) * jax.lax.rsqrt(var + BN_EPS) * gamma + beta, 0.0)
    ref = ref.reshape(B, S, OUT_DIM)

    # f32-operand path, small row tile -> multi-step grid + ragged last tile: tight check.
    out_f32 = linear_layer_forward(x, w, gamma, beta, mxu_dtype=None, block_rows=64)
    out_f32 = jax.block_until_ready(out_f32)
    assert out_f32.shape == (B, S, OUT_DIM)
    assert jnp.allclose(out_f32, ref, atol=1e-3, rtol=1e-3), \
        float(jnp.max(jnp.abs(out_f32 - ref)))

    # Default bf16 MXU-operand path (f32 accumulation / f32 BN math): looser check.
    out_bf16 = linear_layer_forward(x, w, gamma, beta, block_rows=64)
    out_bf16 = jax.block_until_ready(out_bf16)
    assert out_bf16.shape == (B, S, OUT_DIM)
    assert jnp.allclose(out_bf16, ref, atol=3e-2, rtol=3e-2), \
        float(jnp.max(jnp.abs(out_bf16 - ref)))

    # Auto-tiled path (exercises per-generation VMEM budgeting + block_rows selection).
    out_auto = linear_layer_forward(x, w, gamma, beta)
    out_auto = jax.block_until_ready(out_auto)
    assert out_auto.shape == (B, S, OUT_DIM)
    assert jnp.allclose(out_auto, ref, atol=3e-2, rtol=3e-2), \
        float(jnp.max(jnp.abs(out_auto - ref)))

    print("KERNEL_OK")
</pallas_src>

<mosaic_0001>
module attributes {stable_mosaic.version = 11 : i64} {
  func.func @_stats_kernel(%arg0: i32, %arg1: memref<64x32xf32, #tpu.memory_space<vmem>>, %arg2: memref<32x64xf32, #tpu.memory_space<vmem>>, %arg3: memref<1x64xf32, #tpu.memory_space<vmem>>, %arg4: memref<1x64xf32, #tpu.memory_space<vmem>>) attributes {dimension_semantics = [#tpu.dimension_semantics<arbitrary>], iteration_bounds = array<i64: 4>, scalar_prefetch = 0 : i64, scratch_operands = 0 : i64, tpu.core_type = #tpu.core_type<tc>, window_params = [{transform_indices = @transform_0, window_bounds = array<i64: 64, 32>}, {pipeline_mode = #tpu.pipeline_mode<synchronous>, transform_indices = @transform_1, window_bounds = array<i64: 32, 64>}, {pipeline_mode = #tpu.pipeline_mode<synchronous>, transform_indices = @transform_2, window_bounds = array<i64: 1, 64>}, {pipeline_mode = #tpu.pipeline_mode<synchronous>, transform_indices = @transform_3, window_bounds = array<i64: 1, 64>}]} {
    %c0_i32 = arith.constant 0 : i32
    %0 = arith.cmpi eq, %arg0, %c0_i32 : i32
    %1 = arith.extui %0 : i1 to i32
    %c0_i32_0 = arith.constant 0 : i32
    %2 = arith.cmpi ne, %1, %c0_i32_0 : i32
    scf.if %2 {
      %cst_15 = arith.constant 0.000000e+00 : f32
      %25 = vector.broadcast %cst_15 : f32 to vector<1x64xf32>
      %c0_16 = arith.constant 0 : index
      %c0_17 = arith.constant 0 : index
      %26 = vector.load %arg3[%c0_16, %c0_17] : memref<1x64xf32, #tpu.memory_space<vmem>>, vector<1x64xf32>
      tpu.vector_store %arg3[%c0_16, %c0_17], %25 {strides = array<i32>} : memref<1x64xf32, #tpu.memory_space<vmem>>, vector<1x64xf32>,
      %cst_18 = arith.constant 0.000000e+00 : f32
      %27 = vector.broadcast %cst_18 : f32 to vector<1x64xf32>
      %c0_19 = arith.constant 0 : index
      %c0_20 = arith.constant 0 : index
      %28 = vector.load %arg4[%c0_19, %c0_20] : memref<1x64xf32, #tpu.memory_space<vmem>>, vector<1x64xf32>
      tpu.vector_store %arg4[%c0_19, %c0_20], %27 {strides = array<i32>} : memref<1x64xf32, #tpu.memory_space<vmem>>, vector<1x64xf32>,
    } else {
    }
    %c0 = arith.constant 0 : index
    %c0_1 = arith.constant 0 : index
    %3 = vector.load %arg1[%c0, %c0_1] : memref<64x32xf32, #tpu.memory_space<vmem>>, vector<64x32xf32>
    %4 = tpu.iota {dimensions = array<i32: 0>} : vector<64x32xi32>
    %c64_i32 = arith.constant 64 : i32
    %5 = arith.muli %arg0, %c64_i32 : i32
    %6 = vector.broadcast %5 : i32 to vector<64x32xi32>
    %7 = arith.addi %4, %6 : vector<64x32xi32>
    %c200_i32 = arith.constant 200 : i32
    %8 = vector.broadcast %c200_i32 : i32 to vector<64x32xi32>
    %9 = arith.cmpi slt, %7, %8 : vector<64x32xi32>
    %cst = arith.constant 0.000000e+00 : f32
    %10 = vector.broadcast %cst : f32 to vector<64x32xf32>
    %11 = arith.select %9, %3, %10 : vector<64x32xi1>, vector<64x32xf32>
    %c0_2 = arith.constant 0 : index
    %c0_3 = arith.constant 0 : index
    %12 = vector.load %arg2[%c0_2, %c0_3] : memref<32x64xf32, #tpu.memory_space<vmem>>, vector<32x64xf32>
    %cst_4 = arith.constant dense<0.000000e+00> : vector<64x64xf32>
    %13 = tpu.matmul %11, %12, %cst_4 {dimension_numbers = #tpu.dot_dimension_numbers<[1], [0], [0], [1], [0, 0, 1, 1], [], []>} : vector<64x32xf32>, vector<32x64xf32>, vector<64x64xf32> -> vector<64x64xf32>
    %c0_5 = arith.constant 0 : index
    %c0_6 = arith.constant 0 : index
    %14 = vector.load %arg3[%c0_5, %c0_6] : memref<1x64xf32, #tpu.memory_space<vmem>>, vector<1x64xf32>
    %cst_7 = arith.constant dense<0.000000e+00> : vector<64xf32>
    %15 = vector.multi_reduction <add>, %13, %cst_7 [0] : vector<64x64xf32> to vector<64xf32>
    %16 = vector.shape_cast %15 : vector<64xf32> to vector<1x64xf32>
    %17 = arith.addf %14, %16 : vector<1x64xf32>
    %c0_8 = arith.constant 0 : index
    %c0_9 = arith.constant 0 : index
    %18 = vector.load %arg3[%c0_8, %c0_9] : memref<1x64xf32, #tpu.memory_space<vmem>>, vector<1x64xf32>
    tpu.vector_store %arg3[%c0_8, %c0_9], %17 {strides = array<i32>} : memref<1x64xf32, #tpu.memory_space<vmem>>, vector<1x64xf32>,
    %c0_10 = arith.constant 0 : index
    %c0_11 = arith.constant 0 : index
    %19 = vector.load %arg4[%c0_10, %c0_11] : memref<1x64xf32, #tpu.memory_space<vmem>>, vector<1x64xf32>
    %20 = arith.mulf %13, %13 : vector<64x64xf32>
    %cst_12 = arith.constant dense<0.000000e+00> : vector<64xf32>
    %21 = vector.multi_reduction <add>, %20, %cst_12 [0] : vector<64x64xf32> to vector<64xf32>
    %22 = vector.shape_cast %21 : vector<64xf32> to vector<1x64xf32>
    %23 = arith.addf %19, %22 : vector<1x64xf32>
    %c0_13 = arith.constant 0 : index
    %c0_14 = arith.constant 0 : index
    %24 = vector.load %arg4[%c0_13, %c0_14] : memref<1x64xf32, #tpu.memory_space<vmem>>, vector<1x64xf32>
    tpu.vector_store %arg4[%c0_13, %c0_14], %23 {strides = array<i32>} : memref<1x64xf32, #tpu.memory_space<vmem>>, vector<1x64xf32>,
    return
  }
  func.func @transform_0(%arg0: i32) -> (i32, i32) {
    %c0_i32 = arith.constant 0 : i32
    %c0_i32_0 = arith.constant 0 : i32
    return %arg0, %c0_i32 : i32, i32
  }
  func.func @transform_1(%arg0: i32) -> (i32, i32) {
    %c0_i32 = arith.constant 0 : i32
    %c0_i32_0 = arith.constant 0 : i32
    %c0_i32_1 = arith.constant 0 : i32
    return %c0_i32, %c0_i32_0 : i32, i32
  }
  func.func @transform_2(%arg0: i32) -> (i32, i32) {
    %c0_i32 = arith.constant 0 : i32
    %c0_i32_0 = arith.constant 0 : i32
    %c0_i32_1 = arith.constant 0 : i32
    return %c0_i32, %c0_i32_0 : i32, i32
  }
  func.func @transform_3(%arg0: i32) -> (i32, i32) {
    %c0_i32 = arith.constant 0 : i32
    %c0_i32_0 = arith.constant 0 : i32
    %c0_i32_1 = arith.constant 0 : i32
    return %c0_i32, %c0_i32_0 : i32, i32
  }
}

module attributes {stable_mosaic.version = 11 : i64} {
  func.func @_bn_relu_kernel(%arg0: i32, %arg1: memref<64x32xf32, #tpu.memory_space<vmem>>, %arg2: memref<32x64xf32, #tpu.memory_space<vmem>>, %arg3: memref<1x64xf32, #tpu.memory_space<vmem>>, %arg4: memref<1x64xf32, #tpu.memory_space<vmem>>, %arg5: memref<64x64xf32, #tpu.memory_space<vmem>>) attributes {dimension_semantics = [#tpu.dimension_semantics<parallel>], iteration_bounds = array<i64: 4>, scalar_prefetch = 0 : i64, scratch_operands = 0 : i64, tpu.core_type = #tpu.core_type<tc>, window_params = [{transform_indices = @transform_0, window_bounds = array<i64: 64, 32>}, {pipeline_mode = #tpu.pipeline_mode<synchronous>, transform_indices = @transform_1, window_bounds = array<i64: 32, 64>}, {pipeline_mode = #tpu.pipeline_mode<synchronous>, transform_indices = @transform_2, window_bounds = array<i64: 1, 64>}, {pipeline_mode = #tpu.pipeline_mode<synchronous>, transform_indices = @transform_3, window_bounds = array<i64: 1, 64>}, {transform_indices = @transform_4, window_bounds = array<i64: 64, 64>}]} {
    %c0 = arith.constant 0 : index
    %c0_0 = arith.constant 0 : index
    %0 = vector.load %arg1[%c0, %c0_0] : memref<64x32xf32, #tpu.memory_space<vmem>>, vector<64x32xf32>
    %c0_1 = arith.constant 0 : index
    %c0_2 = arith.constant 0 : index
    %1 = vector.load %arg2[%c0_1, %c0_2] : memref<32x64xf32, #tpu.memory_space<vmem>>, vector<32x64xf32>
    %cst = arith.constant dense<0.000000e+00> : vector<64x64xf32>
    %2 = tpu.matmul %0, %1, %cst {dimension_numbers = #tpu.dot_dimension_numbers<[1], [0], [0], [1], [0, 0, 1, 1], [], []>} : vector<64x32xf32>, vector<32x64xf32>, vector<64x64xf32> -> vector<64x64xf32>
    %c0_3 = arith.constant 0 : index
    %c0_4 = arith.constant 0 : index
    %3 = vector.load %arg3[%c0_3, %c0_4] : memref<1x64xf32, #tpu.memory_space<vmem>>, vector<1x64xf32>
    %4 = vector.broadcast %3 : vector<1x64xf32> to vector<64x64xf32>
    %5 = arith.mulf %2, %4 : vector<64x64xf32>
    %c0_5 = arith.constant 0 : index
    %c0_6 = arith.constant 0 : index
    %6 = vector.load %arg4[%c0_5, %c0_6] : memref<1x64xf32, #tpu.memory_space<vmem>>, vector<1x64xf32>
    %7 = vector.broadcast %6 : vector<1x64xf32> to vector<64x64xf32>
    %8 = arith.addf %5, %7 : vector<64x64xf32>
    %cst_7 = arith.constant 0.000000e+00 : f32
    %9 = vector.broadcast %cst_7 : f32 to vector<64x64xf32>
    %10 = arith.maximumf %8, %9 : vector<64x64xf32>
    %c0_8 = arith.constant 0 : index
    %c0_9 = arith.constant 0 : index
    %11 = vector.load %arg5[%c0_8, %c0_9] : memref<64x64xf32, #tpu.memory_space<vmem>>, vector<64x64xf32>
    tpu.vector_store %arg5[%c0_8, %c0_9], %10 {strides = array<i32>} : memref<64x64xf32, #tpu.memory_space<vmem>>, vector<64x64xf32>,
    return
  }
  func.func @transform_0(%arg0: i32) -> (i32, i32) {
    %c0_i32 = arith.constant 0 : i32
    %c0_i32_0 = arith.constant 0 : i32
    return %arg0, %c0_i32 : i32, i32
  }
  func.func @transform_1(%arg0: i32) -> (i32, i32) {
    %c0_i32 = arith.constant 0 : i32
    %c0_i32_0 = arith.constant 0 : i32
    %c0_i32_1 = arith.constant 0 : i32
    return %c0_i32, %c0_i32_0 : i32, i32
  }
  func.func @transform_2(%arg0: i32) -> (i32, i32) {
    %c0_i32 = arith.constant 0 : i32
    %c0_i32_0 = arith.constant 0 : i32
    %c0_i32_1 = arith.constant 0 : i32
    return %c0_i32, %c0_i32_0 : i32, i32
  }
  func.func @transform_3(%arg0: i32) -> (i32, i32) {
    %c0_i32 = arith.constant 0 : i32
    %c0_i32_0 = arith.constant 0 : i32
    %c0_i32_1 = arith.constant 0 : i32
    return %c0_i32, %c0_i32_0 : i32, i32
  }
  func.func @transform_4(%arg0: i32) -> (i32, i32) {
    %c0_i32 = arith.constant 0 : i32
    %c0_i32_0 = arith.constant 0 : i32
    return %arg0, %c0_i32 : i32, i32
  }
}

</mosaic_0001>

<llo_original>
// kernel: linear_layer_forward.2
$region0: #{linear_layer_forward.2}
  #allocation0 [shape = 'u32[]', space=smem, size = 0x4, offset = 0x4, fixed_abs, tag = 'smem constant byte address 0x4 - core index']
  #allocation1 [shape = 'u32[144,128]{1,0:T(1,128)}', space=vmem, size = 0x12000, scoped, tag = 'internal scratch']
  %s0 = inlined_call_operand.vmem [shape: f32[200,32], index: 0, kind: input, shape index: {}]
  %s1 = inlined_call_operand.vmem [shape: f32[32,64], index: 1, kind: input, shape index: {}]
  %s2 = inlined_call_operand.vmem [shape: f32[1,64], index: 2, kind: output, shape index: {0}]
  %s3 = inlined_call_operand.vmem [shape: f32[1,64], index: 3, kind: output, shape index: {1}]
  %4 = xla_tuple %s2, %s3
  %s5 = sld [smem:[#allocation0]]
  $region53: #{linear_layer_forward.2} parent=0
    _
  %s7 = ssub.s32 1, %s5
  %s8 = scalar_select 0, %s7, %s5
  loop: start=0, step=1, limit=6
  $region2: #{linear_layer_forward.2} parent=0 // loop_pre_header
    _
  $region3: #{linear_layer_forward.2} parent=0 // loop_header
    %s10 = sphi 0, %s14
    %p11 = scmp.ge.s32.totalorder %s10, 6
    %s20 = sphi 0, %s22
    %s23 = sphi 0, %s20
    %s24 = sphi 0, %s23
    %s40 = sphi 0, %s24
    %s44 = sphi 0, %s44
    %s46 = sphi 0, %s44
    %s47 = sphi 0, %s46
    %s61 = sphi 0, %s47
    %s65 = sphi 0, %s65
    %s67 = sphi 0, %s65
    %s68 = sphi 0, %s67
    %s82 = sphi 0, %s68
    %s86 = sphi 0, %s86
    %s88 = sphi 0, %s86
    %s89 = sphi 0, %s88
    %s103 = sphi 0, %s89
  $region4: #{linear_layer_forward.2} parent=0 // loop_header_branch
    %13 = sbr.rel (%p11) target = $region8
  $region5: #{linear_layer_forward.2} parent=0 // loop_body
    %s15 = ssub.s32 %s10, 1
    %s16 = ssub.s32 %s10, 2
    %s17 = sadd.s32 %s10, 1
    %s18 = ssub.s32 %s10, %s17
    %p19 = scmp.eq.s32.totalorder %s18, 0
    %s21 = sadd.s32 %s20, 1
    %s22 = scalar_select %p19, %s20, %s21
    %p25 = pneg %p19
    %p26 = scmp.eq.s32.totalorder %s10, 3
    %p27 = por %p25, %p26
    %p28 = scmp.ne.s32.totalorder %s20, %s23
    %p29 = scmp.eq.s32.totalorder %s10, 0
    %p30 = por %p28, %p29
    %p31 = scmp.ne.s32.totalorder %s20, %s23
    %p32 = scmp.eq.s32.totalorder %s15, 3
    %p33 = por %p31, %p32
    %p34 = scmp.ne.s32.totalorder %s23, %s24
    %p35 = scmp.eq.s32.totalorder %s15, 0
    %p36 = por %p34, %p35
    %p37 = scmp.ne.s32.totalorder %s23, %s24
    %p38 = scmp.eq.s32.totalorder %s16, 3
    %p39 = por %p37, %p38
    %p41 = scmp.ne.s32.totalorder %s24, %s40
    %p42 = scmp.eq.s32.totalorder %s16, 0
    %p43 = por %p41, %p42
    %s45 = sadd.s32 %s44, 1
    %p48 = scmp.eq.s32.totalorder %s10, 3
    %p49 = scmp.ne.s32.totalorder %s44, %s46
    %p50 = scmp.eq.s32.totalorder %s10, 0
    %p51 = por %p49, %p50
    %p52 = scmp.ne.s32.totalorder %s44, %s46
    %p53 = scmp.eq.s32.totalorder %s15, 3
    %p54 = por %p52, %p53
    %p55 = scmp.ne.s32.totalorder %s46, %s47
    %p56 = scmp.eq.s32.totalorder %s15, 0
    %p57 = por %p55, %p56
    %p58 = scmp.ne.s32.totalorder %s46, %s47
    %p59 = scmp.eq.s32.totalorder %s16, 3
    %p60 = por %p58, %p59
    %p62 = scmp.ne.s32.totalorder %s47, %s61
    %p63 = scmp.eq.s32.totalorder %s16, 0
    %p64 = por %p62, %p63
    %s66 = sadd.s32 %s65, 1
    %p69 = scmp.eq.s32.totalorder %s10, 3
    %p70 = scmp.ne.s32.totalorder %s65, %s67
    %p71 = scmp.eq.s32.totalorder %s10, 0
    %p72 = por %p70, %p71
    %p73 = scmp.ne.s32.totalorder %s65, %s67
    %p74 = scmp.eq.s32.totalorder %s15, 3
    %p75 = por %p73, %p74
    %p76 = scmp.ne.s32.totalorder %s67, %s68
    %p77 = scmp.eq.s32.totalorder %s15, 0
    %p78 = por %p76, %p77
    %p79 = scmp.ne.s32.totalorder %s67, %s68
    %p80 = scmp.eq.s32.totalorder %s16, 3
    %p81 = por %p79, %p80
    %p83 = scmp.ne.s32.totalorder %s68, %s82
    %p84 = scmp.eq.s32.totalorder %s16, 0
    %p85 = por %p83, %p84
    %s87 = sadd.s32 %s86, 1
    %p90 = scmp.eq.s32.totalorder %s10, 3
    %p91 = scmp.ne.s32.totalorder %s86, %s88
    %p92 = scmp.eq.s32.totalorder %s10, 0
    %p93 = por %p91, %p92
    %p94 = scmp.ne.s32.totalorder %s86, %s88
    %p95 = scmp.eq.s32.totalorder %s15, 3
    %p96 = por %p94, %p95
    %p97 = scmp.ne.s32.totalorder %s88, %s89
    %p98 = scmp.eq.s32.totalorder %s15, 0
    %p99 = por %p97, %p98
    %p100 = scmp.ne.s32.totalorder %s88, %s89
    %p101 = scmp.eq.s32.totalorder %s16, 3
    %p102 = por %p100, %p101
    %p104 = scmp.ne.s32.totalorder %s89, %s103
    %p105 = scmp.eq.s32.totalorder %s16, 0
    %p106 = por %p104, %p105
    %p107 = scmp.le.s32.totalorder 1, %s10
    %p108 = scmp.lt.s32.totalorder %s10, 5
    %p109 = pnand %p107, %p108
    %p110 = pneg %p109
    // Predicated region
    $region9: #{linear_layer_forward.2} parent=5 // pred_check
      _
    $region10: #{linear_layer_forward.2} parent=5 // pred_check_branch
      %112 = sbr.rel (%p109) target = $region12
    $region11: #{linear_layer_forward.2} parent=5 // pred_region
      %s113 = ssub.s32 %s10, 1
      // Predicated region
      $region13: #{linear_layer_forward.2} parent=11 // pred_check
        %p114 = pneg %p57
      $region14: #{linear_layer_forward.2} parent=11 // pred_check_branch
        %116 = sbr.rel (%p114) target = $region16
      $region15: #{linear_layer_forward.2} parent=11 // pred_region
        _
      $region16: #{linear_layer_forward.2} parent=11 // pred_fallthru
        _
    $region12: #{linear_layer_forward.2} parent=5 // pred_fallthru
      _
    %p117 = scmp.lt.s32.totalorder %s10, 4
    // Predicated region
    $region17: #{linear_layer_forward.2} parent=5 // pred_check
      %p118 = pneg %p117
    $region18: #{linear_layer_forward.2} parent=5 // pred_check_branch
      %120 = sbr.rel (%p118) target = $region20
    $region19: #{linear_layer_forward.2} parent=5 // pred_region
      // Predicated region
      $region21: #{linear_layer_forward.2} parent=19 // pred_check
        %p121 = pneg %p30
      $region22: #{linear_layer_forward.2} parent=19 // pred_check_branch
        %123 = sbr.rel (%p121) target = $region24
      $region23: #{linear_layer_forward.2} parent=19 // pred_region
        %s124 = smul.u32 8, %s10
        %s125 = ssub.s32 25, %s124
        %p126 = scmp.lt.s32.totalorder %s125, 8
        %s127 = scalar_select %p126, %s125, 8
        %s128 = smul.u32 128, %s127
        %p129 = scmp.lt.s32.totalorder %s124, 24
        %s130 = scalar_select %p129, %s124, 24
        %s131 = smul.addr %s130, 8
        %s132 = scalar_lea.vmem %s0, %s131
        %s133 = smul.u32 8, %s10
        %s134 = ssub.s32 25, %s133
        %p135 = scmp.lt.s32.totalorder %s134, 8
        %s136 = scalar_select %p135, %s134, 8
        %s137 = smul.u32 128, %s136
      $region24: #{linear_layer_forward.2} parent=19 // pred_fallthru
        _
    $region20: #{linear_layer_forward.2} parent=5 // pred_fallthru
      _
    %p138 = scmp.le.s32.totalorder 1, %s10
    %p139 = scmp.lt.s32.totalorder %s10, 5
    %p140 = pnand %p138, %p139
    %p141 = pneg %p140
    // Predicated region
    $region25: #{linear_layer_forward.2} parent=5 // pred_check
      _
    $region26: #{linear_layer_forward.2} parent=5 // pred_check_branch
      %143 = sbr.rel (%p140) target = $region28
    $region27: #{linear_layer_forward.2} parent=5 // pred_region
      %s144 = ssub.s32 %s10, 1
      %s145 = smul.u32 8, %s15
      %s146 = ssub.s32 25, %s145
      %p147 = scmp.lt.s32.totalorder %s146, 8
      %s148 = scalar_select %p147, %s146, 8
      %s149 = smul.u32 128, %s148
      %p150 = scmp.lt.s32.totalorder %s145, 24
      %s151 = scalar_select %p150, %s145, 24
      %s152 = smul.addr %s151, 8
      %s153 = scalar_lea.vmem %s0, %s152
      %p154 = pneg %p36
      %p155 = pneg %p33
      %p156 = pneg %p57
      %p157 = pneg %p54
      %p158 = pneg %p78
      %p159 = pneg %p75
      %p160 = pneg %p99
      %p161 = pneg %p96
      %s162 = smul.u32 8, %s15
      %s163 = ssub.s32 25, %s162
      %p164 = scmp.lt.s32.totalorder %s163, 8
      %s165 = scalar_select %p164, %s163, 8
      %s166 = smul.u32 128, %s165
      %p167 = scmp.lt.s32.totalorder %s162, 24
      %s168 = scalar_select %p167, %s162, 24
      %s169 = smul.addr %s168, 8
      %s170 = scalar_lea.vmem %s0, %s169
      %s171 = smul.u32 8, %s15
      %s172 = ssub.s32 25, %s171
      %p173 = scmp.lt.s32.totalorder %s172, 8
      %s174 = scalar_select %p173, %s172, 8
      %s175 = smul.u32 128, %s174
      %p176 = scmp.eq.s32.totalorder %s15, 0
      // Predicated region
      $region29: #{linear_layer_forward.2} parent=27 // pred_check
        %p177 = pneg %p176
      $region30: #{linear_layer_forward.2} parent=27 // pred_check_branch
        %179 = sbr.rel (%p177) target = $region32
      $region31: #{linear_layer_forward.2} parent=27 // pred_region
        %vm180 = vcmask 516096
        %181 = vst.msk [vmem:[%s2] sm:$0x1] %vm180, 0.0
        %182 = vst.msk [vmem:[%s3] sm:$0x1] %vm180, 0.0
      $region32: #{linear_layer_forward.2} parent=27 // pred_fallthru
        _
      %v183 = vld [vmem:[%s170] sm:$0xff]
      %v184 = vld [vmem:[%s170 + $0x8] sm:$0xff]
      %v185 = vld [vmem:[%s170 + $0x10] sm:$0xff]
      %v186 = vld [vmem:[%s170 + $0x18] sm:$0xff]
      %v187 = vld [vmem:[%s170 + $0x20] sm:$0xff]
      %v188 = vld [vmem:[%s170 + $0x28] sm:$0xff]
      %v189 = vld [vmem:[%s170 + $0x30] sm:$0xff]
      %v190 = vld [vmem:[%s170 + $0x38] sm:$0xff]
      %v191 = vlaneseq
      %v192 = vshrl.u32 %v191, 7
      %v193 = vadd.s32 %v192, 8
      %v194 = vadd.s32 %v192, 16
      %v195 = vadd.s32 %v192, 24
      %v196 = vadd.s32 %v192, 32
      %v197 = vadd.s32 %v192, 40
      %v198 = vadd.s32 %v192, 48
      %v199 = vadd.s32 %v192, 56
      %s200 = smul.u32 %s15, 64
      %v201 = vstv %s200
      %v202 = vadd.s32 %v192, %v201
      %v203 = vadd.s32 %v193, %v201
      %v204 = vadd.s32 %v194, %v201
      %v205 = vadd.s32 %v195, %v201
      %v206 = vadd.s32 %v196, %v201
      %v207 = vadd.s32 %v197, %v201
      %v208 = vadd.s32 %v198, %v201
      %v209 = vadd.s32 %v199, %v201
      %vm210 = vcmp.lt.s32.totalorder %v202, 200
      %vm211 = vcmp.lt.s32.totalorder %v203, 200
      %vm212 = vcmp.lt.s32.totalorder %v204, 200
      %vm213 = vcmp.lt.s32.totalorder %v205, 200
      %vm214 = vcmp.lt.s32.totalorder %v206, 200
      %vm215 = vcmp.lt.s32.totalorder %v207, 200
      %vm216 = vcmp.lt.s32.totalorder %v208, 200
      %vm217 = vcmp.lt.s32.totalorder %v209, 200
      %v218 = vsel %vm210, %v183, 0.0
      %v219 = vsel %vm211, %v184, 0.0
      %v220 = vsel %vm212, %v185, 0.0
      %v221 = vsel %vm213, %v186, 0.0
      %v222 = vsel %vm214, %v187, 0.0
      %v223 = vsel %vm215, %v188, 0.0
      %v224 = vsel %vm216, %v189, 0.0
      %v225 = vsel %vm217, %v190, 0.0
      %v226 = vld [vmem:[%s1] sm:$0xff]
      %v227 = vld [vmem:[%s1 + $0x8] sm:$0xff]
      %v228 = vld [vmem:[%s1 + $0x10] sm:$0xff]
      %v229 = vld [vmem:[%s1 + $0x18] sm:$0xff]
      %vm230 = vcmask 261120
      %v232 = vsel %vm230, %v218, 0
      %v235 = vsel %vm230, %v219, 0
      %v238 = vsel %vm230, %v220, 0
      %v241 = vsel %vm230, %v221, 0
      %v244 = vsel %vm230, %v222, 0
      %v247 = vsel %vm230, %v223, 0
      %v250 = vsel %vm230, %v224, 0
      %v253 = vsel %vm230, %v225, 0
      %255 = vmatprep.subr.mxu0 0.0
      %256 = vmatpush1.msra.mxu0 0.0
      %257 = vmatprep.subr.mxu0 0.0
      %258 = vmatpush1.msra.mxu0 0.0
      %259 = vmatprep.subr.mxu0 0.0
      %260 = vmatpush1.msra.mxu0 0.0
      %261 = vmatprep.subr.mxu0 0.0
      %262 = vmatpush1.msra.mxu0 0.0
      %263 = vmatprep.subr.mxu0 0.0
      %264 = vmatpush1.msra.mxu0 0.0
      %265 = vmatprep.subr.mxu0 0.0
      %266 = vmatpush1.msra.mxu0 0.0
      %267 = vmatprep.subr.mxu0 0.0
      %268 = vmatpush1.msra.mxu0 0.0
      %269 = vmatprep.subr.mxu0 0.0
      %270 = vmatpush1.msra.mxu0 0.0
      %271 = vmatprep.subr.mxu0 0.0
      %272 = vmatpush1.msra.mxu0 0.0
      %273 = vmatprep.subr.mxu0 0.0
      %274 = vmatpush1.msra.mxu0 0.0
      %275 = vmatprep.subr.mxu0 0.0
      %276 = vmatpush1.msra.mxu0 0.0
      %277 = vmatprep.subr.mxu0 0.0
      %278 = vmatpush1.msra.mxu0 0.0
      %279 = vmatprep.subr.mxu0 0.0
      %280 = vmatpush1.msra.mxu0 %v229
      %281 = vmatprep.subr.mxu0 0.0
      %282 = vmatpush1.msra.mxu0 %v228
      %283 = vmatprep.subr.mxu0 0.0
      %284 = vmatpush1.msra.mxu0 %v227
      %285 = vmatprep.subr.mxu0 0.0
      %286 = vmatpush1.msra.mxu0 %v226
      %287 = vmatprep.subr.mxu0 0.0
      %288 = vmatpush2.msra.mxu0 0.0
      %289 = vmatprep.subr.mxu0 0.0
      %290 = vmatpush2.msra.mxu0 0.0
      %291 = vmatprep.subr.mxu0 0.0
      %292 = vmatpush2.msra.mxu0 0.0
      %293 = vmatprep.subr.mxu0 0.0
      %294 = vmatpush2.msra.mxu0 0.0
      %295 = vmatprep.subr.mxu0 0.0
      %296 = vmatpush2.msra.mxu0 0.0
      %297 = vmatprep.subr.mxu0 0.0
      %298 = vmatpush2.msra.mxu0 0.0
      %299 = vmatprep.subr.mxu0 0.0
      %300 = vmatpush2.msra.mxu0 0.0
      %301 = vmatprep.subr.mxu0 0.0
      %302 = vmatpush2.msra.mxu0 0.0
      %303 = vmatprep.subr.mxu0 0.0
      %304 = vmatpush2.msra.mxu0 0.0
      %305 = vmatprep.subr.mxu0 0.0
      %306 = vmatpush2.msra.mxu0 0.0
      %307 = vmatprep.subr.mxu0 0.0
      %308 = vmatpush2.msra.mxu0 0.0
      %309 = vmatprep.subr.mxu0 0.0
      %310 = vmatpush2.msra.mxu0 0.0
      %311 = vmatprep.subr.mxu0 0.0
      %312 = vmatpush2.msra.mxu0 0.0
      %313 = vmatprep.subr.mxu0 0.0
      %314 = vmatpush2.msra.mxu0 0.0
      %315 = vmatprep.subr.mxu0 0.0
      %316 = vmatpush2.msra.mxu0 0.0
      %317 = vmatprep.subr.mxu0 0.0
      %318 = vmatpush2.msra.mxu0 0.0
      %319 = vmatprep.mubr.f32.mxu0 0.0
      %320 = vmatmul.mubr.f32.gmra.mxu0 %v232
      %v321 = vpop.f32.mrf.mxu0
      %v322 = vadd.f32 0.0, %v321
      %v323 = vpop.f32.mrf.mxu0
      %324 = vmatprep.mubr.f32.mxu0 0.0
      %325 = vmatmul.mubr.f32.gmra.mxu0 %v235
      %v326 = vpop.f32.mrf.mxu0
      %v327 = vadd.f32 0.0, %v326
      %v328 = vpop.f32.mrf.mxu0
      %329 = vmatprep.mubr.f32.mxu0 0.0
      %330 = vmatmul.mubr.f32.gmra.mxu0 %v238
      %v331 = vpop.f32.mrf.mxu0
      %v332 = vadd.f32 0.0, %v331
      %v333 = vpop.f32.mrf.mxu0
      %334 = vmatprep.mubr.f32.mxu0 0.0
      %335 = vmatmul.mubr.f32.gmra.mxu0 %v241
      %v336 = vpop.f32.mrf.mxu0
      %v337 = vadd.f32 0.0, %v336
      %v338 = vpop.f32.mrf.mxu0
      %339 = vmatprep.mubr.f32.mxu0 0.0
      %340 = vmatmul.mubr.f32.gmra.mxu0 %v244
      %v341 = vpop.f32.mrf.mxu0
      %v342 = vadd.f32 0.0, %v341
      %v343 = vpop.f32.mrf.mxu0
      %344 = vmatprep.mubr.f32.mxu0 0.0
      %345 = vmatmul.mubr.f32.gmra.mxu0 %v247
      %v346 = vpop.f32.mrf.mxu0
      %v347 = vadd.f32 0.0, %v346
      %v348 = vpop.f32.mrf.mxu0
      %349 = vmatprep.mubr.f32.mxu0 0.0
      %350 = vmatmul.mubr.f32.gmra.mxu0 %v250
      %v351 = vpop.f32.mrf.mxu0
      %v352 = vadd.f32 0.0, %v351
      %v353 = vpop.f32.mrf.mxu0
      %354 = vmatprep.mubr.f32.mxu0 0.0
      %355 = vmatmul.mubr.f32.gmra.mxu0 %v253
      %v356 = vpop.f32.mrf.mxu0
      %v357 = vadd.f32 0.0, %v356
      %v358 = vpop.f32.mrf.mxu0
      %359 = vdwg.mxu0
      %v360 = vld [vmem:[%s2] sm:$0x1]
      %vm361 = vcmask 523264
      %v362 = vsel %vm361, %v322, 0.0
      %v363 = vsel %vm361, %v327, 0.0
      %v364 = vadd.f32 %v362, %v363
      %v365 = vsel %vm361, %v332, 0.0
      %v366 = vadd.f32 %v364, %v365
      %v367 = vsel %vm361, %v337, 0.0
      %v368 = vadd.f32 %v366, %v367
      %v369 = vsel %vm361, %v342, 0.0
      %v370 = vadd.f32 %v368, %v369
      %v371 = vsel %vm361, %v347, 0.0
      %v372 = vadd.f32 %v370, %v371
      %v373 = vsel %vm361, %v352, 0.0
      %v374 = vadd.f32 %v372, %v373
      %v375 = vsel %vm361, %v357, 0.0
      %v376 = vadd.f32 %v374, %v375
      %v377 = vrot.slane %v376, 4
      %v378 = vadd.f32 %v376, %v377
      %v379 = vrot.slane %v378, 2
      %v380 = vadd.f32 %v378, %v379
      %v381 = vrot.slane %v380, 1
      %v382 = vadd.f32 %v380, %v381
      %v383 = vadd.f32 %v360, %v382
      %vm384 = vcmask 516096
      %385 = vst.msk [vmem:[%s2] sm:$0x1] %vm384, %v383
      %v386 = vld [vmem:[%s3] sm:$0x1]
      %v387 = vmul.f32 %v322, %v322
      %v388 = vmul.f32 %v327, %v327
      %v389 = vmul.f32 %v332, %v332
      %v390 = vmul.f32 %v337, %v337
      %v391 = vmul.f32 %v342, %v342
      %v392 = vmul.f32 %v347, %v347
      %v393 = vmul.f32 %v352, %v352
      %v394 = vmul.f32 %v357, %v357
      %v395 = vsel %vm361, %v387, 0.0
      %v396 = vsel %vm361, %v388, 0.0
      %v397 = vadd.f32 %v395, %v396
      %v398 = vsel %vm361, %v389, 0.0
      %v399 = vadd.f32 %v397, %v398
      %v400 = vsel %vm361, %v390, 0.0
      %v401 = vadd.f32 %v399, %v400
      %v402 = vsel %vm361, %v391, 0.0
      %v403 = vadd.f32 %v401, %v402
      %v404 = vsel %vm361, %v392, 0.0
      %v405 = vadd.f32 %v403, %v404
      %v406 = vsel %vm361, %v393, 0.0
      %v407 = vadd.f32 %v405, %v406
      %v408 = vsel %vm361, %v394, 0.0
      %v409 = vadd.f32 %v407, %v408
      %v410 = vrot.slane %v409, 4
      %v411 = vadd.f32 %v409, %v410
      %v412 = vrot.slane %v411, 2
      %v413 = vadd.f32 %v411, %v412
      %v414 = vrot.slane %v413, 1
      %v415 = vadd.f32 %v413, %v414
      %v416 = vadd.f32 %v386, %v415
      %417 = vst.msk [vmem:[%s3] sm:$0x1] %vm384, %v416
      // Predicated region
      $region33: #{linear_layer_forward.2} parent=27 // pred_check
        %p418 = pneg %p75
      $region34: #{linear_layer_forward.2} parent=27 // pred_check_branch
        %420 = sbr.rel (%p418) target = $region36
      $region35: #{linear_layer_forward.2} parent=27 // pred_region
        _
      $region36: #{linear_layer_forward.2} parent=27 // pred_fallthru
        _
      // Predicated region
      $region37: #{linear_layer_forward.2} parent=27 // pred_check
        %p421 = pneg %p96
      $region38: #{linear_layer_forward.2} parent=27 // pred_check_branch
        %423 = sbr.rel (%p421) target = $region40
      $region39: #{linear_layer_forward.2} parent=27 // pred_region
        _
      $region40: #{linear_layer_forward.2} parent=27 // pred_fallthru
        _
      // Predicated region
      $region41: #{linear_layer_forward.2} parent=27 // pred_check
        %p424 = pneg %p75
      $region42: #{linear_layer_forward.2} parent=27 // pred_check_branch
        %426 = sbr.rel (%p424) target = $region44
      $region43: #{linear_layer_forward.2} parent=27 // pred_region
        _
      $region44: #{linear_layer_forward.2} parent=27 // pred_fallthru
        _
      // Predicated region
      $region45: #{linear_layer_forward.2} parent=27 // pred_check
        %p427 = pneg %p96
      $region46: #{linear_layer_forward.2} parent=27 // pred_check_branch
        %429 = sbr.rel (%p427) target = $region48
      $region47: #{linear_layer_forward.2} parent=27 // pred_region
        _
      $region48: #{linear_layer_forward.2} parent=27 // pred_fallthru
        _
    $region28: #{linear_layer_forward.2} parent=5 // pred_fallthru
      _
    %p430 = scmp.le.s32.totalorder 2, %s10
    // Predicated region
    $region49: #{linear_layer_forward.2} parent=5 // pred_check
      %p431 = pneg %p430
    $region50: #{linear_layer_forward.2} parent=5 // pred_check_branch
      %433 = sbr.rel (%p431) target = $region52
    $region51: #{linear_layer_forward.2} parent=5 // pred_region
      %s434 = ssub.s32 %s10, 2
    $region52: #{linear_layer_forward.2} parent=5 // pred_fallthru
      _
  $region6: #{linear_layer_forward.2} parent=0 // loop_footer
    %s14 = sadd.s32 1, %s10
  $region7: #{linear_layer_forward.2} parent=0 // loop_footer_branch
    %9 = sbr.rel target = $region3
  $region8: #{linear_layer_forward.2} parent=0 // loop_exit
    _

// kernel: linear_layer_forward.3
$region0: #{linear_layer_forward.3}
  #allocation0 [shape = 'u32[]', space=smem, size = 0x4, offset = 0x4, fixed_abs, tag = 'smem constant byte address 0x4 - core index']
  #allocation1 [shape = 'u32[144,128]{1,0:T(1,128)}', space=vmem, size = 0x12000, scoped, tag = 'internal scratch']
  %s0 = inlined_call_operand.vmem [shape: f32[200,32], index: 0, kind: input, shape index: {}]
  %s1 = inlined_call_operand.vmem [shape: f32[32,64], index: 1, kind: input, shape index: {}]
  %s2 = inlined_call_operand.vmem [shape: f32[1,64], index: 2, kind: input, shape index: {}]
  %s3 = inlined_call_operand.vmem [shape: f32[1,64], index: 3, kind: input, shape index: {}]
  %s4 = inlined_call_operand.vmem [shape: f32[200,64], index: 4, kind: output, shape index: {}]
  %s5 = sld [smem:[#allocation0]]
  $region97: #{linear_layer_forward.3} parent=0
    _
  %s7 = ssub.s32 1, %s5
  %s8 = scalar_select 0, %s7, %s5
  $region1: #{linear_layer_forward.3} parent=0
    #allocation2 [shape = 'u8[65536]{0}', space=vmem, size = 0x10000, scoped, tag = 'output window, operand 0']
    loop: start=0, step=1, limit=6
    $region2: #{linear_layer_forward.3} parent=1 // loop_pre_header
      _
    $region3: #{linear_layer_forward.3} parent=1 // loop_header
      %s10 = sphi 0, %s14
      %p11 = scmp.ge.s32.totalorder %s10, 6
      %s20 = sphi 0, %s22
      %s23 = sphi 0, %s20
      %s24 = sphi 0, %s23
      %s40 = sphi 0, %s24
      %s44 = sphi 0, %s44
      %s46 = sphi 0, %s44
      %s47 = sphi 0, %s46
      %s61 = sphi 0, %s47
      %s65 = sphi 0, %s65
      %s67 = sphi 0, %s65
      %s68 = sphi 0, %s67
      %s82 = sphi 0, %s68
      %s86 = sphi 0, %s86
      %s88 = sphi 0, %s86
      %s89 = sphi 0, %s88
      %s103 = sphi 0, %s89
      %s109 = sphi 0, %s111
      %s112 = sphi 0, %s109
      %s113 = sphi 0, %s112
      %s129 = sphi 0, %s113
    $region4: #{linear_layer_forward.3} parent=1 // loop_header_branch
      %13 = sbr.rel (%p11) target = $region8
    $region5: #{linear_layer_forward.3} parent=1 // loop_body
      %s15 = ssub.s32 %s10, 1
      %s16 = ssub.s32 %s10, 2
      %s17 = sadd.s32 %s10, 1
      %s18 = ssub.s32 %s10, %s17
      %p19 = scmp.eq.s32.totalorder %s18, 0
      %s21 = sadd.s32 %s20, 1
      %s22 = scalar_select %p19, %s20, %s21
      %p25 = pneg %p19
      %p26 = scmp.eq.s32.totalorder %s10, 3
      %p27 = por %p25, %p26
      %p28 = scmp.ne.s32.totalorder %s20, %s23
      %p29 = scmp.eq.s32.totalorder %s10, 0
      %p30 = por %p28, %p29
      %p31 = scmp.ne.s32.totalorder %s20, %s23
      %p32 = scmp.eq.s32.totalorder %s15, 3
      %p33 = por %p31, %p32
      %p34 = scmp.ne.s32.totalorder %s23, %s24
      %p35 = scmp.eq.s32.totalorder %s15, 0
      %p36 = por %p34, %p35
      %p37 = scmp.ne.s32.totalorder %s23, %s24
      %p38 = scmp.eq.s32.totalorder %s16, 3
      %p39 = por %p37, %p38
      %p41 = scmp.ne.s32.totalorder %s24, %s40
      %p42 = scmp.eq.s32.totalorder %s16, 0
      %p43 = por %p41, %p42
      %s45 = sadd.s32 %s44, 1
      %p48 = scmp.eq.s32.totalorder %s10, 3
      %p49 = scmp.ne.s32.totalorder %s44, %s46
      %p50 = scmp.eq.s32.totalorder %s10, 0
      %p51 = por %p49, %p50
      %p52 = scmp.ne.s32.totalorder %s44, %s46
      %p53 = scmp.eq.s32.totalorder %s15, 3
      %p54 = por %p52, %p53
      %p55 = scmp.ne.s32.totalorder %s46, %s47
      %p56 = scmp.eq.s32.totalorder %s15, 0
      %p57 = por %p55, %p56
      %p58 = scmp.ne.s32.totalorder %s46, %s47
      %p59 = scmp.eq.s32.totalorder %s16, 3
      %p60 = por %p58, %p59
      %p62 = scmp.ne.s32.totalorder %s47, %s61
      %p63 = scmp.eq.s32.totalorder %s16, 0
      %p64 = por %p62, %p63
      %s66 = sadd.s32 %s65, 1
      %p69 = scmp.eq.s32.totalorder %s10, 3
      %p70 = scmp.ne.s32.totalorder %s65, %s67
      %p71 = scmp.eq.s32.totalorder %s10, 0
      %p72 = por %p70, %p71
      %p73 = scmp.ne.s32.totalorder %s65, %s67
      %p74 = scmp.eq.s32.totalorder %s15, 3
      %p75 = por %p73, %p74
      %p76 = scmp.ne.s32.totalorder %s67, %s68
      %p77 = scmp.eq.s32.totalorder %s15, 0
      %p78 = por %p76, %p77
      %p79 = scmp.ne.s32.totalorder %s67, %s68
      %p80 = scmp.eq.s32.totalorder %s16, 3
      %p81 = por %p79, %p80
      %p83 = scmp.ne.s32.totalorder %s68, %s82
      %p84 = scmp.eq.s32.totalorder %s16, 0
      %p85 = por %p83, %p84
      %s87 = sadd.s32 %s86, 1
      %p90 = scmp.eq.s32.totalorder %s10, 3
      %p91 = scmp.ne.s32.totalorder %s86, %s88
      %p92 = scmp.eq.s32.totalorder %s10, 0
      %p93 = por %p91, %p92
      %p94 = scmp.ne.s32.totalorder %s86, %s88
      %p95 = scmp.eq.s32.totalorder %s15, 3
      %p96 = por %p94, %p95
      %p97 = scmp.ne.s32.totalorder %s88, %s89
      %p98 = scmp.eq.s32.totalorder %s15, 0
      %p99 = por %p97, %p98
      %p100 = scmp.ne.s32.totalorder %s88, %s89
      %p101 = scmp.eq.s32.totalorder %s16, 3
      %p102 = por %p100, %p101
      %p104 = scmp.ne.s32.totalorder %s89, %s103
      %p105 = scmp.eq.s32.totalorder %s16, 0
      %p106 = por %p104, %p105
      %s107 = ssub.s32 %s10, %s17
      %p108 = scmp.eq.s32.totalorder %s107, 0
      %s110 = sadd.s32 %s109, 1
      %s111 = scalar_select %p108, %s109, %s110
      %p114 = pneg %p108
      %p115 = scmp.eq.s32.totalorder %s10, 3
      %p116 = por %p114, %p115
      %p117 = scmp.ne.s32.totalorder %s109, %s112
      %p118 = scmp.eq.s32.totalorder %s10, 0
      %p119 = por %p117, %p118
      %p120 = scmp.ne.s32.totalorder %s109, %s112
      %p121 = scmp.eq.s32.totalorder %s15, 3
      %p122 = por %p120, %p121
      %p123 = scmp.ne.s32.totalorder %s112, %s113
      %p124 = scmp.eq.s32.totalorder %s15, 0
      %p125 = por %p123, %p124
      %p126 = scmp.ne.s32.totalorder %s112, %s113
      %p127 = scmp.eq.s32.totalorder %s16, 3
      %p128 = por %p126, %p127
      %p130 = scmp.ne.s32.totalorder %s113, %s129
      %p131 = scmp.eq.s32.totalorder %s16, 0
      %p132 = por %p130, %p131
      %p133 = scmp.le.s32.totalorder 1, %s10
      %p134 = scmp.lt.s32.totalorder %s10, 5
      %p135 = pnand %p133, %p134
      %p136 = pneg %p135
      // Predicated region
      $region9: #{linear_layer_forward.3} parent=5 // pred_check
        _
      $region10: #{linear_layer_forward.3} parent=5 // pred_check_branch
        %138 = sbr.rel (%p135) target = $region12
      $region11: #{linear_layer_forward.3} parent=5 // pred_region
        %s139 = ssub.s32 %s10, 1
        // Predicated region
        $region13: #{linear_layer_forward.3} parent=11 // pred_check
          %p140 = pneg %p57
        $region14: #{linear_layer_forward.3} parent=11 // pred_check_branch
          %142 = sbr.rel (%p140) target = $region16
        $region15: #{linear_layer_forward.3} parent=11 // pred_region
          _
        $region16: #{linear_layer_forward.3} parent=11 // pred_fallthru
          _
        // Predicated region
        $region17: #{linear_layer_forward.3} parent=11 // pred_check
          %p143 = pneg %p78
        $region18: #{linear_layer_forward.3} parent=11 // pred_check_branch
          %145 = sbr.rel (%p143) target = $region20
        $region19: #{linear_layer_forward.3} parent=11 // pred_region
          _
        $region20: #{linear_layer_forward.3} parent=11 // pred_fallthru
          _
        // Predicated region
        $region21: #{linear_layer_forward.3} parent=11 // pred_check
          %p146 = pneg %p99
        $region22: #{linear_layer_forward.3} parent=11 // pred_check_branch
          %148 = sbr.rel (%p146) target = $region24
        $region23: #{linear_layer_forward.3} parent=11 // pred_region
          _
        $region24: #{linear_layer_forward.3} parent=11 // pred_fallthru
          _
      $region12: #{linear_layer_forward.3} parent=5 // pred_fallthru
        _
      %p149 = scmp.lt.s32.totalorder %s10, 4
      // Predicated region
      $region25: #{linear_layer_forward.3} parent=5 // pred_check
        %p150 = pneg %p149
      $region26: #{linear_layer_forward.3} parent=5 // pred_check_branch
        %152 = sbr.rel (%p150) target = $region28
      $region27: #{linear_layer_forward.3} parent=5 // pred_region
        // Predicated region
        $region29: #{linear_layer_forward.3} parent=27 // pred_check
          %p153 = pneg %p30
        $region30: #{linear_layer_forward.3} parent=27 // pred_check_branch
          %155 = sbr.rel (%p153) target = $region32
        $region31: #{linear_layer_forward.3} parent=27 // pred_region
          %s156 = smul.u32 8, %s10
          %s157 = ssub.s32 25, %s156
          %p158 = scmp.lt.s32.totalorder %s157, 8
          %s159 = scalar_select %p158, %s157, 8
          %s160 = smul.u32 128, %s159
          %p161 = scmp.lt.s32.totalorder %s156, 24
          %s162 = scalar_select %p161, %s156, 24
          %s163 = smul.addr %s162, 8
          %s164 = scalar_lea.vmem %s0, %s163
          %s165 = smul.u32 8, %s10
          %s166 = ssub.s32 25, %s165
          %p167 = scmp.lt.s32.totalorder %s166, 8
          %s168 = scalar_select %p167, %s166, 8
          %s169 = smul.u32 128, %s168
        $region32: #{linear_layer_forward.3} parent=27 // pred_fallthru
          _
      $region28: #{linear_layer_forward.3} parent=5 // pred_fallthru
        _
      %p170 = scmp.le.s32.totalorder 1, %s10
      %p171 = scmp.lt.s32.totalorder %s10, 5
      %p172 = pnand %p170, %p171
      %p173 = pneg %p172
      // Predicated region
      $region33: #{linear_layer_forward.3} parent=5 // pred_check
        _
      $region34: #{linear_layer_forward.3} parent=5 // pred_check_branch
        %175 = sbr.rel (%p172) target = $region36
      $region35: #{linear_layer_forward.3} parent=5 // pred_region
        %s176 = ssub.s32 %s10, 1
        %s177 = smul.u32 8, %s15
        %s178 = ssub.s32 25, %s177
        %p179 = scmp.lt.s32.totalorder %s178, 8
        %s180 = scalar_select %p179, %s178, 8
        %s181 = smul.u32 128, %s180
        %p182 = scmp.lt.s32.totalorder %s177, 24
        %s183 = scalar_select %p182, %s177, 24
        %s184 = smul.addr %s183, 8
        %s185 = scalar_lea.vmem %s0, %s184
        %p186 = pneg %p36
        %p187 = pneg %p33
        %p188 = pneg %p57
        %p189 = pneg %p54
        %p190 = pneg %p78
        %p191 = pneg %p75
        %p192 = pneg %p99
        %p193 = pneg %p96
        %p194 = pneg %p125
        %p195 = pneg %p122
        %s196 = sand.u32 %s112, 1
        %s197 = sand.u32 %s112, 1
        %s198 = smul.addr %s197, 64
        %s199 = scalar_lea.vmem [#allocation2], %s198
        %s200 = smul.u32 8, %s15
        %s201 = ssub.s32 25, %s200
        %p202 = scmp.lt.s32.totalorder %s201, 8
        %s203 = scalar_select %p202, %s201, 8
        %s204 = smul.u32 128, %s203
        %p205 = scmp.lt.s32.totalorder %s200, 24
        %s206 = scalar_select %p205, %s200, 24
        %s207 = smul.addr %s206, 8
        %s208 = scalar_lea.vmem %s0, %s207
        %s209 = smul.u32 8, %s15
        %s210 = ssub.s32 25, %s209
        %p211 = scmp.lt.s32.totalorder %s210, 8
        %s212 = scalar_select %p211, %s210, 8
        %s213 = smul.u32 128, %s212
        %s214 = smul.u32 8, %s15
        %s215 = ssub.s32 25, %s214
        %p216 = scmp.lt.s32.totalorder %s215, 8
        %s217 = scalar_select %p216, %s215, 8
        %s218 = smul.u32 128, %s217
        %v219 = vld [vmem:[%s208] sm:$0xff]
        %v220 = vld [vmem:[%s208 + $0x8] sm:$0xff]
        %v221 = vld [vmem:[%s208 + $0x10] sm:$0xff]
        %v222 = vld [vmem:[%s208 + $0x18] sm:$0xff]
        %v223 = vld [vmem:[%s208 + $0x20] sm:$0xff]
        %v224 = vld [vmem:[%s208 + $0x28] sm:$0xff]
        %v225 = vld [vmem:[%s208 + $0x30] sm:$0xff]
        %v226 = vld [vmem:[%s208 + $0x38] sm:$0xff]
        %v227 = vld [vmem:[%s1] sm:$0xff]
        %v228 = vld [vmem:[%s1 + $0x8] sm:$0xff]
        %v229 = vld [vmem:[%s1 + $0x10] sm:$0xff]
        %v230 = vld [vmem:[%s1 + $0x18] sm:$0xff]
        %vm231 = vcmask 261120
        %v233 = vsel %vm231, %v219, 0
        %v236 = vsel %vm231, %v220, 0
        %v239 = vsel %vm231, %v221, 0
        %v242 = vsel %vm231, %v222, 0
        %v245 = vsel %vm231, %v223, 0
        %v248 = vsel %vm231, %v224, 0
        %v251 = vsel %vm231, %v225, 0
        %v254 = vsel %vm231, %v226, 0
        %256 = vmatprep.subr.mxu0 0.0
        %257 = vmatpush1.msra.mxu0 0.0
        %258 = vmatprep.subr.mxu0 0.0
        %259 = vmatpush1.msra.mxu0 0.0
        %260 = vmatprep.subr.mxu0 0.0
        %261 = vmatpush1.msra.mxu0 0.0
        %262 = vmatprep.subr.mxu0 0.0
        %263 = vmatpush1.msra.mxu0 0.0
        %264 = vmatprep.subr.mxu0 0.0
        %265 = vmatpush1.msra.mxu0 0.0
        %266 = vmatprep.subr.mxu0 0.0
        %267 = vmatpush1.msra.mxu0 0.0
        %268 = vmatprep.subr.mxu0 0.0
        %269 = vmatpush1.msra.mxu0 0.0
        %270 = vmatprep.subr.mxu0 0.0
        %271 = vmatpush1.msra.mxu0 0.0
        %272 = vmatprep.subr.mxu0 0.0
        %273 = vmatpush1.msra.mxu0 0.0
        %274 = vmatprep.subr.mxu0 0.0
        %275 = vmatpush1.msra.mxu0 0.0
        %276 = vmatprep.subr.mxu0 0.0
        %277 = vmatpush1.msra.mxu0 0.0
        %278 = vmatprep.subr.mxu0 0.0
        %279 = vmatpush1.msra.mxu0 0.0
        %280 = vmatprep.subr.mxu0 0.0
        %281 = vmatpush1.msra.mxu0 %v230
        %282 = vmatprep.subr.mxu0 0.0
        %283 = vmatpush1.msra.mxu0 %v229
        %284 = vmatprep.subr.mxu0 0.0
        %285 = vmatpush1.msra.mxu0 %v228
        %286 = vmatprep.subr.mxu0 0.0
        %287 = vmatpush1.msra.mxu0 %v227
        %288 = vmatprep.subr.mxu0 0.0
        %289 = vmatpush2.msra.mxu0 0.0
        %290 = vmatprep.subr.mxu0 0.0
        %291 = vmatpush2.msra.mxu0 0.0
        %292 = vmatprep.subr.mxu0 0.0
        %293 = vmatpush2.msra.mxu0 0.0
        %294 = vmatprep.subr.mxu0 0.0
        %295 = vmatpush2.msra.mxu0 0.0
        %296 = vmatprep.subr.mxu0 0.0
        %297 = vmatpush2.msra.mxu0 0.0
        %298 = vmatprep.subr.mxu0 0.0
        %299 = vmatpush2.msra.mxu0 0.0
        %300 = vmatprep.subr.mxu0 0.0
        %301 = vmatpush2.msra.mxu0 0.0
        %302 = vmatprep.subr.mxu0 0.0
        %303 = vmatpush2.msra.mxu0 0.0
        %304 = vmatprep.subr.mxu0 0.0
        %305 = vmatpush2.msra.mxu0 0.0
        %306 = vmatprep.subr.mxu0 0.0
        %307 = vmatpush2.msra.mxu0 0.0
        %308 = vmatprep.subr.mxu0 0.0
        %309 = vmatpush2.msra.mxu0 0.0
        %310 = vmatprep.subr.mxu0 0.0
        %311 = vmatpush2.msra.mxu0 0.0
        %312 = vmatprep.subr.mxu0 0.0
        %313 = vmatpush2.msra.mxu0 0.0
        %314 = vmatprep.subr.mxu0 0.0
        %315 = vmatpush2.msra.mxu0 0.0
        %316 = vmatprep.subr.mxu0 0.0
        %317 = vmatpush2.msra.mxu0 0.0
        %318 = vmatprep.subr.mxu0 0.0
        %319 = vmatpush2.msra.mxu0 0.0
        %320 = vmatprep.mubr.f32.mxu0 0.0
        %321 = vmatmul.mubr.f32.gmra.mxu0 %v233
        %v322 = vpop.f32.mrf.mxu0
        %v323 = vadd.f32 0.0, %v322
        %v324 = vpop.f32.mrf.mxu0
        %325 = vmatprep.mubr.f32.mxu0 0.0
        %326 = vmatmul.mubr.f32.gmra.mxu0 %v236
        %v327 = vpop.f32.mrf.mxu0
        %v328 = vadd.f32 0.0, %v327
        %v329 = vpop.f32.mrf.mxu0
        %330 = vmatprep.mubr.f32.mxu0 0.0
        %331 = vmatmul.mubr.f32.gmra.mxu0 %v239
        %v332 = vpop.f32.mrf.mxu0
        %v333 = vadd.f32 0.0, %v332
        %v334 = vpop.f32.mrf.mxu0
        %335 = vmatprep.mubr.f32.mxu0 0.0
        %336 = vmatmul.mubr.f32.gmra.mxu0 %v242
        %v337 = vpop.f32.mrf.mxu0
        %v338 = vadd.f32 0.0, %v337
        %v339 = vpop.f32.mrf.mxu0
        %340 = vmatprep.mubr.f32.mxu0 0.0
        %341 = vmatmul.mubr.f32.gmra.mxu0 %v245
        %v342 = vpop.f32.mrf.mxu0
        %v343 = vadd.f32 0.0, %v342
        %v344 = vpop.f32.mrf.mxu0
        %345 = vmatprep.mubr.f32.mxu0 0.0
        %346 = vmatmul.mubr.f32.gmra.mxu0 %v248
        %v347 = vpop.f32.mrf.mxu0
        %v348 = vadd.f32 0.0, %v347
        %v349 = vpop.f32.mrf.mxu0
        %350 = vmatprep.mubr.f32.mxu0 0.0
        %351 = vmatmul.mubr.f32.gmra.mxu0 %v251
        %v352 = vpop.f32.mrf.mxu0
        %v353 = vadd.f32 0.0, %v352
        %v354 = vpop.f32.mrf.mxu0
        %355 = vmatprep.mubr.f32.mxu0 0.0
        %356 = vmatmul.mubr.f32.gmra.mxu0 %v254
        %v357 = vpop.f32.mrf.mxu0
        %v358 = vadd.f32 0.0, %v357
        %v359 = vpop.f32.mrf.mxu0
        %360 = vdwg.mxu0
        %v361 = vld [vmem:[%s2] sm:$0x1]
        %v363 = vlaneseq
        %v364 = vshrl.u32 %v363, 7
        %v365 = vsub.s32 0, %v364
        %v366 = vrot.slane %v361, %v365
        %v368 = vmul.f32 %v323, %v366
        %v369 = vmul.f32 %v328, %v366
        %v370 = vmul.f32 %v333, %v366
        %v371 = vmul.f32 %v338, %v366
        %v372 = vmul.f32 %v343, %v366
        %v373 = vmul.f32 %v348, %v366
        %v374 = vmul.f32 %v353, %v366
        %v375 = vmul.f32 %v358, %v366
        %v376 = vld [vmem:[%s3] sm:$0x1]
        %v378 = vlaneseq
        %v379 = vshrl.u32 %v378, 7
        %v380 = vsub.s32 0, %v379
        %v381 = vrot.slane %v376, %v380
        %v383 = vadd.f32 %v368, %v381
        %v384 = vadd.f32 %v369, %v381
        %v385 = vadd.f32 %v370, %v381
        %v386 = vadd.f32 %v371, %v381
        %v387 = vadd.f32 %v372, %v381
        %v388 = vadd.f32 %v373, %v381
        %v389 = vadd.f32 %v374, %v381
        %v390 = vadd.f32 %v375, %v381
        %v391 = vmax.f32 %v383, 0.0
        %v392 = vmax.f32 %v384, 0.0
        %v393 = vmax.f32 %v385, 0.0
        %v394 = vmax.f32 %v386, 0.0
        %v395 = vmax.f32 %v387, 0.0
        %v396 = vmax.f32 %v388, 0.0
        %v397 = vmax.f32 %v389, 0.0
        %v398 = vmax.f32 %v390, 0.0
        %vm399 = vcmask 523264
        %400 = vst.msk [vmem:[%s199] sm:$0xff] %vm399, %v391
        %401 = vst.msk [vmem:[%s199 + $0x8] sm:$0xff] %vm399, %v392
        %402 = vst.msk [vmem:[%s199 + $0x10] sm:$0xff] %vm399, %v393
        %403 = vst.msk [vmem:[%s199 + $0x18] sm:$0xff] %vm399, %v394
        %404 = vst.msk [vmem:[%s199 + $0x20] sm:$0xff] %vm399, %v395
        %405 = vst.msk [vmem:[%s199 + $0x28] sm:$0xff] %vm399, %v396
        %406 = vst.msk [vmem:[%s199 + $0x30] sm:$0xff] %vm399, %v397
        %407 = vst.msk [vmem:[%s199 + $0x38] sm:$0xff] %vm399, %v398
        %s408 = sand.u32 %s112, 1
        %s409 = sand.u32 %s112, 1
        %s410 = smul.addr %s409, 64
        %s411 = scalar_lea.vmem [#allocation2], %s410
        // Predicated region
        $region37: #{linear_layer_forward.3} parent=35 // pred_check
          %p412 = pneg %p122
        $region38: #{linear_layer_forward.3} parent=35 // pred_check_branch
          %414 = sbr.rel (%p412) target = $region40
        $region39: #{linear_layer_forward.3} parent=35 // pred_region
          %s415 = smul.u32 8, %s15
          %s416 = ssub.s32 25, %s415
          %p417 = scmp.lt.s32.totalorder %s416, 8
          %s418 = scalar_select %p417, %s416, 8
          %s419 = smul.u32 128, %s418
          %p420 = scmp.ne.s32.totalorder 0, %s419
          %s421 = smul.addr %s415, 8
          %s422 = scalar_lea.vmem %s4, %s421
          // Predicated region
          $region41: #{linear_layer_forward.3} parent=39 // pred_check
            %p423 = pneg %p420
          $region42: #{linear_layer_forward.3} parent=39 // pred_check_branch
            %425 = sbr.rel (%p423) target = $region44
          $region43: #{linear_layer_forward.3} parent=39 // pred_region
            // Predicated region
            $region45: #{linear_layer_forward.3} parent=43 // pred_check
              _
            $region46: #{linear_layer_forward.3} parent=43 // pred_check_branch
              %427 = sbr.rel (0) target = $region48
            $region47: #{linear_layer_forward.3} parent=43 // pred_region
              // Predicated region
              $region67: #{linear_layer_forward.3} parent=47 // pred_check
                _
              $region68: #{linear_layer_forward.3} parent=47 // pred_check_branch
                %491 = sbr.rel (0) target = $region70
              $region69: #{linear_layer_forward.3} parent=47 // pred_region
                %s492 = sshrl.u32 %s418, 3
                // While loop
                $region71: #{linear_layer_forward.3} parent=69 // loop_pre_header
                  _
                $region72: #{linear_layer_forward.3} parent=69 // loop_header
                  %s494 = sphi 0, %s496
                  %p495 = scmp.ge.s32.totalorder %s494, %s492
                  %s499 = sphi 0, %s520
                  %s500 = sphi %s411, %s523
                  %s501 = sphi %s422, %s524
                $region73: #{linear_layer_forward.3} parent=69 // loop_header_branch
                  %498 = sbr.rel (%p495) target = $region77
                $region74: #{linear_layer_forward.3} parent=69 // loop_body
                  %v502 = vld [vmem:[%s500] sm:$0xff]
                  %503 = vst [vmem:[%s501] sm:$0xff] %v502
                  %v504 = vld [vmem:[%s500 + $0x8] sm:$0xff]
                  %505 = vst [vmem:[%s501 + $0x8] sm:$0xff] %v504
                  %v506 = vld [vmem:[%s500 + $0x10] sm:$0xff]
                  %507 = vst [vmem:[%s501 + $0x10] sm:$0xff] %v506
                  %v508 = vld [vmem:[%s500 + $0x18] sm:$0xff]
                  %509 = vst [vmem:[%s501 + $0x18] sm:$0xff] %v508
                  %v510 = vld [vmem:[%s500 + $0x20] sm:$0xff]
                  %511 = vst [vmem:[%s501 + $0x20] sm:$0xff] %v510
                  %v512 = vld [vmem:[%s500 + $0x28] sm:$0xff]
                  %513 = vst [vmem:[%s501 + $0x28] sm:$0xff] %v512
                  %v514 = vld [vmem:[%s500 + $0x30] sm:$0xff]
                  %515 = vst [vmem:[%s501 + $0x30] sm:$0xff] %v514
                  %v516 = vld [vmem:[%s500 + $0x38] sm:$0xff]
                  %517 = vst [vmem:[%s501 + $0x38] sm:$0xff] %v516
                  %s518 = sadd.s32 1, %s499
                  %p519 = scmp.ge.s32.totalorder %s518, %s492
                  %s520 = scalar_select %p519, 0, %s518
                  %s521 = smul.u32 %s520, 64
                  %s522 = smul.u32 %s520, 64
                  %s523 = scalar_lea.vmem %s411, %s521 [#allocation2]
                  %s524 = scalar_lea.vmem %s422, %s522
                $region75: #{linear_layer_forward.3} parent=69 // loop_footer
                  %s496 = sadd.s32 %s494, 1
                $region76: #{linear_layer_forward.3} parent=69 // loop_footer_branch
                  %493 = sbr.rel target = $region72
                $region77: #{linear_layer_forward.3} parent=69 // loop_exit
                  _
                %s525 = sshrl.u32 %s418, 3
                %s526 = sand.u32 %s418, 7
                %s527 = smul.u32 %s525, 8
                %s528 = smul.u32 8, %s527
                %s529 = scalar_lea.vmem %s411, %s528 [#allocation2]
                %s530 = smul.u32 8, %s527
                %s531 = scalar_lea.vmem %s422, %s530
                // While loop
                $region78: #{linear_layer_forward.3} parent=69 // loop_pre_header
                  _
                $region79: #{linear_layer_forward.3} parent=69 // loop_header
                  %s533 = sphi 0, %s535
                  %p534 = scmp.ge.s32.totalorder %s533, %s526
                  %s538 = sphi 0, %s545
                  %s539 = sphi %s529, %s548
                  %s540 = sphi %s531, %s549
                $region80: #{linear_layer_forward.3} parent=69 // loop_header_branch
                  %537 = sbr.rel (%p534) target = $region84
                $region81: #{linear_layer_forward.3} parent=69 // loop_body
                  %v541 = vld [vmem:[%s539] sm:$0xff]
                  %542 = vst [vmem:[%s540] sm:$0xff] %v541
                  %s543 = sadd.s32 1, %s538
                  %p544 = scmp.ge.s32.totalorder %s543, %s526
                  %s545 = scalar_select %p544, 0, %s543
                  %s546 = smul.u32 %s545, 8
                  %s547 = smul.u32 %s545, 8
                  %s548 = scalar_lea.vmem %s529, %s546 [#allocation2]
                  %s549 = scalar_lea.vmem %s531, %s547
                $region82: #{linear_layer_forward.3} parent=69 // loop_footer
                  %s535 = sadd.s32 %s533, 1
                $region83: #{linear_layer_forward.3} parent=69 // loop_footer_branch
                  %532 = sbr.rel target = $region79
                $region84: #{linear_layer_forward.3} parent=69 // loop_exit
                  _
              $region70: #{linear_layer_forward.3} parent=47 // pred_fallthru
                _
              // Predicated region
              $region85: #{linear_layer_forward.3} parent=47 // pred_check
                _
              $region86: #{linear_layer_forward.3} parent=47 // pred_check_branch
                %551 = sbr.rel target = $region88
              $region87: #{linear_layer_forward.3} parent=47 // pred_region
                _
              $region88: #{linear_layer_forward.3} parent=47 // pred_fallthru
                _
            $region48: #{linear_layer_forward.3} parent=43 // pred_fallthru
              _
            // Predicated region
            $region49: #{linear_layer_forward.3} parent=43 // pred_check
              _
            $region50: #{linear_layer_forward.3} parent=43 // pred_check_branch
              %429 = sbr.rel target = $region52
            $region51: #{linear_layer_forward.3} parent=43 // pred_region
              %s431 = ssub.s32 256, 1
              %s432 = sshrl.u32 %s418, 3
              // While loop
              $region53: #{linear_layer_forward.3} parent=51 // loop_pre_header
                _
              $region54: #{linear_layer_forward.3} parent=51 // loop_header
                %s434 = sphi 0, %s436
                %p435 = scmp.ge.s32.totalorder %s434, %s432
                %s439 = sphi 0, %s460
                %s440 = sphi %s411, %s463
                %s441 = sphi %s422, %s464
              $region55: #{linear_layer_forward.3} parent=51 // loop_header_branch
                %438 = sbr.rel (%p435) target = $region59
              $region56: #{linear_layer_forward.3} parent=51 // loop_body
                %v442 = vld [vmem:[%s440] sm:%s431]
                %443 = vst [vmem:[%s441] sm:%s431] %v442
                %v444 = vld [vmem:[%s440 + $0x8] sm:%s431]
                %445 = vst [vmem:[%s441 + $0x8] sm:%s431] %v444
                %v446 = vld [vmem:[%s440 + $0x10] sm:%s431]
                %447 = vst [vmem:[%s441 + $0x10] sm:%s431] %v446
                %v448 = vld [vmem:[%s440 + $0x18] sm:%s431]
                %449 = vst [vmem:[%s441 + $0x18] sm:%s431] %v448
                %v450 = vld [vmem:[%s440 + $0x20] sm:%s431]
                %451 = vst [vmem:[%s441 + $0x20] sm:%s431] %v450
                %v452 = vld [vmem:[%s440 + $0x28] sm:%s431]
                %453 = vst [vmem:[%s441 + $0x28] sm:%s431] %v452
                %v454 = vld [vmem:[%s440 + $0x30] sm:%s431]
                %455 = vst [vmem:[%s441 + $0x30] sm:%s431] %v454
                %v456 = vld [vmem:[%s440 + $0x38] sm:%s431]
                %457 = vst [vmem:[%s441 + $0x38] sm:%s431] %v456
                %s458 = sadd.s32 1, %s439
                %p459 = scmp.ge.s32.totalorder %s458, %s432
                %s460 = scalar_select %p459, 0, %s458
                %s461 = smul.u32 %s460, 64
                %s462 = smul.u32 %s460, 64
                %s463 = scalar_lea.vmem %s411, %s461 [#allocation2]
                %s464 = scalar_lea.vmem %s422, %s462
              $region57: #{linear_layer_forward.3} parent=51 // loop_footer
                %s436 = sadd.s32 %s434, 1
              $region58: #{linear_layer_forward.3} parent=51 // loop_footer_branch
                %433 = sbr.rel target = $region54
              $region59: #{linear_layer_forward.3} parent=51 // loop_exit
                _
              %s465 = sshrl.u32 %s418, 3
              %s466 = sand.u32 %s418, 7
              %s467 = smul.u32 %s465, 8
              %s468 = smul.u32 8, %s467
              %s469 = scalar_lea.vmem %s411, %s468 [#allocation2]
              %s470 = smul.u32 8, %s467
              %s471 = scalar_lea.vmem %s422, %s470
              // While loop
              $region60: #{linear_layer_forward.3} parent=51 // loop_pre_header
                _
              $region61: #{linear_layer_forward.3} parent=51 // loop_header
                %s473 = sphi 0, %s475
                %p474 = scmp.ge.s32.totalorder %s473, %s466
                %s478 = sphi 0, %s485
                %s479 = sphi %s469, %s488
                %s480 = sphi %s471, %s489
              $region62: #{linear_layer_forward.3} parent=51 // loop_header_branch
                %477 = sbr.rel (%p474) target = $region66
              $region63: #{linear_layer_forward.3} parent=51 // loop_body
                %v481 = vld [vmem:[%s479] sm:%s431]
                %482 = vst [vmem:[%s480] sm:%s431] %v481
                %s483 = sadd.s32 1, %s478
                %p484 = scmp.ge.s32.totalorder %s483, %s466
                %s485 = scalar_select %p484, 0, %s483
                %s486 = smul.u32 %s485, 8
                %s487 = smul.u32 %s485, 8
                %s488 = scalar_lea.vmem %s469, %s486 [#allocation2]
                %s489 = scalar_lea.vmem %s471, %s487
              $region64: #{linear_layer_forward.3} parent=51 // loop_footer
                %s475 = sadd.s32 %s473, 1
              $region65: #{linear_layer_forward.3} parent=51 // loop_footer_branch
                %472 = sbr.rel target = $region61
              $region66: #{linear_layer_forward.3} parent=51 // loop_exit
                _
            $region52: #{linear_layer_forward.3} parent=43 // pred_fallthru
              _
          $region44: #{linear_layer_forward.3} parent=39 // pred_fallthru
            _
          %552 = vnop
        $region40: #{linear_layer_forward.3} parent=35 // pred_fallthru
          _
      $region36: #{linear_layer_forward.3} parent=5 // pred_fallthru
        _
      %p553 = scmp.le.s32.totalorder 2, %s10
      // Predicated region
      $region89: #{linear_layer_forward.3} parent=5 // pred_check
        %p554 = pneg %p553
      $region90: #{linear_layer_forward.3} parent=5 // pred_check_branch
        %556 = sbr.rel (%p554) target = $region92
      $region91: #{linear_layer_forward.3} parent=5 // pred_region
        %s557 = ssub.s32 %s10, 2
        // Predicated region
        $region93: #{linear_layer_forward.3} parent=91 // pred_check
          %p558 = pneg %p128
        $region94: #{linear_layer_forward.3} parent=91 // pred_check_branch
          %560 = sbr.rel (%p558) target = $region96
        $region95: #{linear_layer_forward.3} parent=91 // pred_region
          %s561 = sand.u32 %s113, 1
          %s562 = sand.u32 %s113, 1
          %s563 = smul.addr %s562, 64
          %s564 = scalar_lea.vmem [#allocation2], %s563
        $region96: #{linear_layer_forward.3} parent=91 // pred_fallthru
          _
      $region92: #{linear_layer_forward.3} parent=5 // pred_fallthru
        _
    $region6: #{linear_layer_forward.3} parent=1 // loop_footer
      %s14 = sadd.s32 1, %s10
    $region7: #{linear_layer_forward.3} parent=1 // loop_footer_branch
      %9 = sbr.rel target = $region3
    $region8: #{linear_layer_forward.3} parent=1 // loop_exit
      _

</llo_original>
